<compile_context>
chip_gen: v7x
topology: tpu7x:2x2x1
jax: 0.10.0
libtpu: 0.0.40
codegen_flags: <defaults>
</compile_context>

<pallas_src>
import functools

import jax
import jax.numpy as jnp
from jax.experimental import pallas as pl
from jax.experimental.pallas import tpu as pltpu


def _round_up(x, m):
    return (x + m - 1) // m * m


def _att_block_kernel(x_ref, w_ref, b_ref, pooled_ref, norm_att_ref, cla_ref,
                      *, n_out, r, activation, approx_recip):
    # x_ref:        (b_block, n_in, T)   compute dtype (bf16 on fast path)
    # w_ref:        (2*r, n_in)          compute dtype  [att rows ; cla rows]
    # b_ref:        (2*r, 1)             f32
    # pooled_ref:   (b_block, n_out, 1)
    # norm_att_ref: (b_block, n_out, T)
    # cla_ref:      (b_block, n_out, T)
    b_block = x_ref.shape[0]

    # Hoisted out of the per-batch loop: loaded once per grid step (and Pallas
    # skips the re-fetch since the weight/bias block index never changes).
    w = w_ref[...]
    bias = b_ref[...]

    # b_block is kept small (<= 8) so a static unroll is cheap.
    for b in range(b_block):
        # Single fused MXU matmul for both branches, f32 accumulation.
        logits = jnp.dot(w, x_ref[b],
                         preferred_element_type=jnp.float32) + bias  # (2*r, T)

        # r is a multiple of 8, so both slices are sublane-tile aligned.
        att = jnp.clip(logits[:r, :], -10.0, 10.0)
        cla = logits[r:, :]

        # clamp() already bounds the logits to [-10, 10], so exp() is safe
        # without the usual max-subtraction (saves a row-reduce + broadcast).
        # Softmax is per-row, so the zero-padded rows (if any) are independent
        # garbage that is trimmed before the store.
        att_exp = jnp.exp(att)                                    # (r, T)
        denom = jnp.sum(att_exp, axis=-1, keepdims=True)          # (r, 1)
        norm_att = att_exp * pl.reciprocal(denom, approx=approx_recip)

        if activation == 'sigmoid':
            cla = jax.nn.sigmoid(cla)
        # 'linear' -> identity

        pooled = jnp.sum(norm_att[:n_out] * cla[:n_out],
                         axis=-1, keepdims=True)                  # (n_out, 1)

        norm_att_ref[b] = norm_att[:n_out].astype(norm_att_ref.dtype)
        cla_ref[b] = cla[:n_out].astype(cla_ref.dtype)
        pooled_ref[b] = pooled.astype(pooled_ref.dtype)


def _choose_b_block(B, n_in, n_out, T, in_itemsize, out_itemsize):
    """Pick how many batch elements to process per grid step."""
    # Per-batch-element footprint of the double-buffered block set
    # (x block + norm_att block + cla block; pooled is negligible).
    per_b = 2 * (n_in * T * in_itemsize + 2 * n_out * T * out_itemsize)
    # Keep the pipelined blocks well under the scoped-VMEM limit (leave
    # headroom for f32 compute vregs/scratch); cap the static unroll at 8.
    budget = 12 * 1024 * 1024
    bb = max(1, min(8, B, budget // max(per_b, 1)))
    # Keep >= 2 grid steps when possible so both v7x TensorCores get work.
    if B >= 2:
        bb = min(bb, max(1, B // 2))
    # Must divide B (blocks tile the batch exactly).
    while B % bb:
        bb -= 1
    return bb


def att_block_forward(x, w_att, b_att, w_cla, b_cla, *,
                      activation='linear',
                      compute_dtype=jnp.bfloat16,
                      out_dtype=jnp.float32,
                      approx_softmax_recip=True,
                      b_block=None):
    """x: (B, n_in, T) float32. Weights: (n_out, n_in), biases: (n_out,).

    Returns (pooled (B, n_out), norm_att (B, n_out, T), cla (B, n_out, T)).
    `out_dtype=jnp.bfloat16` halves output writeback if downstream tolerates it.
    """
    B, n_in, T = x.shape
    n_out = w_att.shape[0]

    # Fuse the two k=1 convolutions into one matmul. Each branch is padded to
    # r rows (multiple of 8) so the in-kernel att/cla split stays tile-aligned.
    r = _round_up(n_out, 8)
    w_fused = jnp.zeros((2 * r, n_in), jnp.float32)
    w_fused = w_fused.at[:n_out].set(w_att).at[r:r + n_out].set(w_cla)
    w_fused = w_fused.astype(compute_dtype)
    b_fused = jnp.zeros((2 * r, 1), jnp.float32)
    b_fused = b_fused.at[:n_out, 0].set(b_att).at[r:r + n_out, 0].set(b_cla)
    x_in = x.astype(compute_dtype)

    in_itemsize = jnp.dtype(compute_dtype).itemsize
    out_itemsize = jnp.dtype(out_dtype).itemsize
    if b_block is None:
        b_block = _choose_b_block(B, n_in, n_out, T, in_itemsize, out_itemsize)
    assert B % b_block == 0, "b_block must divide B"
    grid = (B // b_block,)

    kernel = functools.partial(_att_block_kernel, n_out=n_out, r=r,
                               activation=activation,
                               approx_recip=approx_softmax_recip)

    out_shapes = (
        jax.ShapeDtypeStruct((B, n_out, 1), jnp.float32),  # pooled (squeezed later)
        jax.ShapeDtypeStruct((B, n_out, T), out_dtype),    # norm_att
        jax.ShapeDtypeStruct((B, n_out, T), out_dtype),    # cla
    )

    grid_spec = pltpu.PrefetchScalarGridSpec(
        num_scalar_prefetch=0,
        grid=grid,
        in_specs=[
            pl.BlockSpec((b_block, n_in, T), lambda i: (i, 0, 0)),   # x
            pl.BlockSpec((2 * r, n_in), lambda i: (0, 0)),           # fused weight
            pl.BlockSpec((2 * r, 1), lambda i: (0, 0)),              # fused bias
        ],
        out_specs=[
            pl.BlockSpec((b_block, n_out, 1), lambda i: (i, 0, 0)),  # pooled
            pl.BlockSpec((b_block, n_out, T), lambda i: (i, 0, 0)),  # norm_att
            pl.BlockSpec((b_block, n_out, T), lambda i: (i, 0, 0)),  # cla
        ],
    )

    pooled3, norm_att, cla = pl.pallas_call(
        kernel,
        out_shape=out_shapes,
        grid_spec=grid_spec,
        compiler_params=pltpu.CompilerParams(
            dimension_semantics=("parallel",),
            vmem_limit_bytes=32 * 1024 * 1024,
        ),
    )(x_in, w_fused, b_fused)

    return pooled3[..., 0], norm_att, cla


def _xavier_uniform(key, n_out, n_in):
    # Conv1d weight (n_out, n_in, 1): fan_in = n_in, fan_out = n_out.
    bound = (6.0 / (n_in + n_out)) ** 0.5
    return jax.random.uniform(key, (n_out, n_in), jnp.float32, -bound, bound)


def _reference(x, w_att, b_att, w_cla, b_cla, activation='linear'):
    # Plain-JAX f32 reference mirroring the PyTorch forward.
    att = jnp.einsum('oc,bct->bot', w_att, x) + b_att[None, :, None]
    norm_att = jax.nn.softmax(jnp.clip(att, -10.0, 10.0), axis=-1)
    cla = jnp.einsum('oc,bct->bot', w_cla, x) + b_cla[None, :, None]
    if activation == 'sigmoid':
        cla = jax.nn.sigmoid(cla)
    pooled = jnp.sum(norm_att * cla, axis=2)
    return pooled, norm_att, cla


if __name__ == "__main__":
    key = jax.random.PRNGKey(0)
    B, n_in, n_out, T = 8, 64, 16, 128
    k_x, k_att, k_cla, k_ba, k_bc = jax.random.split(key, 5)

    x = jax.random.normal(k_x, (B, n_in, T), jnp.float32)
    w_att = _xavier_uniform(k_att, n_out, n_in)
    w_cla = _xavier_uniform(k_cla, n_out, n_in)
    # init_layer zeros the bias; use small random biases here to exercise the
    # bias-add path of the forward pass.
    b_att = 0.1 * jax.random.normal(k_ba, (n_out,), jnp.float32)
    b_cla = 0.1 * jax.random.normal(k_bc, (n_out,), jnp.float32)

    # 1) Fast path: bf16 matmul + approx reciprocal, sigmoid activation.
    pooled, norm_att, cla = att_block_forward(
        x, w_att, b_att, w_cla, b_cla, activation='sigmoid')
    jax.block_until_ready((pooled, norm_att, cla))

    ref_pooled, ref_norm_att, ref_cla = _reference(
        x, w_att, b_att, w_cla, b_cla, activation='sigmoid')
    # bf16 matmul inputs + approx reciprocal loosen the tolerance.
    assert jnp.allclose(pooled, ref_pooled, atol=1e-2, rtol=2e-1)
    assert jnp.allclose(norm_att, ref_norm_att, atol=1e-2, rtol=2e-1)
    assert jnp.allclose(cla, ref_cla, atol=1e-2, rtol=2e-1)

    # 2) Exactness check: f32 matmul + exact reciprocal, linear activation.
    pooled32, norm_att32, cla32 = att_block_forward(
        x, w_att, b_att, w_cla, b_cla, activation='linear',
        compute_dtype=jnp.float32, approx_softmax_recip=False)
    jax.block_until_ready((pooled32, norm_att32, cla32))

    ref_pooled32, ref_norm_att32, ref_cla32 = _reference(
        x, w_att, b_att, w_cla, b_cla, activation='linear')
    assert jnp.allclose(pooled32, ref_pooled32, atol=1e-5, rtol=1e-5)
    assert jnp.allclose(norm_att32, ref_norm_att32, atol=1e-5, rtol=1e-5)
    assert jnp.allclose(cla32, ref_cla32, atol=1e-5, rtol=1e-5)

    print("KERNEL_OK")
</pallas_src>

<mosaic_0001>
module attributes {stable_mosaic.version = 11 : i64} {
  func.func @_att_block_kernel(%arg0: i32, %arg1: memref<4x64x128xbf16, #tpu.memory_space<vmem>>, %arg2: memref<32x64xbf16, #tpu.memory_space<vmem>>, %arg3: memref<32x1xf32, #tpu.memory_space<vmem>>, %arg4: memref<4x16x1xf32, #tpu.memory_space<vmem>>, %arg5: memref<4x16x128xf32, #tpu.memory_space<vmem>>, %arg6: memref<4x16x128xf32, #tpu.memory_space<vmem>>) attributes {dimension_semantics = [#tpu.dimension_semantics<parallel>], iteration_bounds = array<i64: 2>, scalar_prefetch = 0 : i64, scratch_operands = 0 : i64, tpu.core_type = #tpu.core_type<tc>, window_params = [{transform_indices = @transform_0, window_bounds = array<i64: 4, 64, 128>}, {pipeline_mode = #tpu.pipeline_mode<synchronous>, transform_indices = @transform_1, window_bounds = array<i64: 32, 64>}, {pipeline_mode = #tpu.pipeline_mode<synchronous>, transform_indices = @transform_2, window_bounds = array<i64: 32, 1>}, {transform_indices = @transform_3, window_bounds = array<i64: 4, 16, 1>}, {transform_indices = @transform_4, window_bounds = array<i64: 4, 16, 128>}, {transform_indices = @transform_5, window_bounds = array<i64: 4, 16, 128>}]} {
    %c0 = arith.constant 0 : index
    %c0_0 = arith.constant 0 : index
    %0 = vector.load %arg2[%c0, %c0_0] : memref<32x64xbf16, #tpu.memory_space<vmem>>, vector<32x64xbf16>
    %c0_1 = arith.constant 0 : index
    %c0_2 = arith.constant 0 : index
    %1 = vector.load %arg3[%c0_1, %c0_2] : memref<32x1xf32, #tpu.memory_space<vmem>>, vector<32x1xf32>
    %c0_3 = arith.constant 0 : index
    %c0_4 = arith.constant 0 : index
    %c0_5 = arith.constant 0 : index
    %2 = vector.load %arg1[%c0_3, %c0_4, %c0_5] : memref<4x64x128xbf16, #tpu.memory_space<vmem>>, vector<1x64x128xbf16>
    %3 = vector.shape_cast %2 : vector<1x64x128xbf16> to vector<64x128xbf16>
    %cst = arith.constant dense<0.000000e+00> : vector<32x128xf32>
    %4 = tpu.matmul %0, %3, %cst {dimension_numbers = #tpu.dot_dimension_numbers<[1], [0], [0], [1], [0, 0, 1, 1], [], []>} : vector<32x64xbf16>, vector<64x128xbf16>, vector<32x128xf32> -> vector<32x128xf32>
    %5 = vector.broadcast %1 : vector<32x1xf32> to vector<32x128xf32>
    %6 = arith.addf %4, %5 : vector<32x128xf32>
    %7 = vector.extract_strided_slice %6 {offsets = [0, 0], sizes = [16, 128], strides = [1, 1]} : vector<32x128xf32> to vector<16x128xf32>
    %cst_6 = arith.constant -1.000000e+01 : f32
    %cst_7 = arith.constant 1.000000e+01 : f32
    %8 = vector.broadcast %cst_6 : f32 to vector<16x128xf32>
    %9 = arith.maximumf %8, %7 : vector<16x128xf32>
    %10 = vector.broadcast %cst_7 : f32 to vector<16x128xf32>
    %11 = arith.minimumf %10, %9 : vector<16x128xf32>
    %12 = vector.extract_strided_slice %6 {offsets = [16, 0], sizes = [16, 128], strides = [1, 1]} : vector<32x128xf32> to vector<16x128xf32>
    %13 = math.exp %11 : vector<16x128xf32>
    %cst_8 = arith.constant dense<0.000000e+00> : vector<16xf32>
    %14 = vector.multi_reduction <add>, %13, %cst_8 [1] : vector<16x128xf32> to vector<16xf32>
    %15 = vector.shape_cast %14 : vector<16xf32> to vector<16x1xf32>
    %16 = tpu.reciprocal %15 {approx = true} : vector<16x1xf32> -> vector<16x1xf32>
    %17 = vector.broadcast %16 : vector<16x1xf32> to vector<16x128xf32>
    %18 = arith.mulf %13, %17 : vector<16x128xf32>
    %19 = arith.negf %12 : vector<16x128xf32>
    %20 = math.exp %19 : vector<16x128xf32>
    %cst_9 = arith.constant 1.000000e+00 : f32
    %21 = vector.broadcast %cst_9 : f32 to vector<16x128xf32>
    %22 = arith.addf %21, %20 : vector<16x128xf32>
    %23 = arith.divf %21, %22 : vector<16x128xf32>
    %24 = arith.mulf %18, %23 : vector<16x128xf32>
    %cst_10 = arith.constant dense<0.000000e+00> : vector<16xf32>
    %25 = vector.multi_reduction <add>, %24, %cst_10 [1] : vector<16x128xf32> to vector<16xf32>
    %26 = vector.shape_cast %25 : vector<16xf32> to vector<16x1xf32>
    %c0_11 = arith.constant 0 : index
    %c0_12 = arith.constant 0 : index
    %c0_13 = arith.constant 0 : index
    %27 = vector.load %arg5[%c0_11, %c0_12, %c0_13] : memref<4x16x128xf32, #tpu.memory_space<vmem>>, vector<1x16x128xf32>
    %28 = vector.shape_cast %27 : vector<1x16x128xf32> to vector<16x128xf32>
    %29 = vector.shape_cast %18 : vector<16x128xf32> to vector<1x16x128xf32>
    tpu.vector_store %arg5[%c0_11, %c0_12, %c0_13], %29 {strides = array<i32>} : memref<4x16x128xf32, #tpu.memory_space<vmem>>, vector<1x16x128xf32>,
    %c0_14 = arith.constant 0 : index
    %c0_15 = arith.constant 0 : index
    %c0_16 = arith.constant 0 : index
    %30 = vector.load %arg6[%c0_14, %c0_15, %c0_16] : memref<4x16x128xf32, #tpu.memory_space<vmem>>, vector<1x16x128xf32>
    %31 = vector.shape_cast %30 : vector<1x16x128xf32> to vector<16x128xf32>
    %32 = vector.shape_cast %23 : vector<16x128xf32> to vector<1x16x128xf32>
    tpu.vector_store %arg6[%c0_14, %c0_15, %c0_16], %32 {strides = array<i32>} : memref<4x16x128xf32, #tpu.memory_space<vmem>>, vector<1x16x128xf32>,
    %c0_17 = arith.constant 0 : index
    %c0_18 = arith.constant 0 : index
    %c0_19 = arith.constant 0 : index
    %33 = vector.load %arg4[%c0_17, %c0_18, %c0_19] : memref<4x16x1xf32, #tpu.memory_space<vmem>>, vector<1x16x1xf32>
    %34 = vector.shape_cast %33 : vector<1x16x1xf32> to vector<16x1xf32>
    %35 = vector.shape_cast %26 : vector<16x1xf32> to vector<1x16x1xf32>
    tpu.vector_store %arg4[%c0_17, %c0_18, %c0_19], %35 {strides = array<i32>} : memref<4x16x1xf32, #tpu.memory_space<vmem>>, vector<1x16x1xf32>,
    %c1 = arith.constant 1 : index
    %c0_20 = arith.constant 0 : index
    %c0_21 = arith.constant 0 : index
    %36 = vector.load %arg1[%c1, %c0_20, %c0_21] : memref<4x64x128xbf16, #tpu.memory_space<vmem>>, vector<1x64x128xbf16>
    %37 = vector.shape_cast %36 : vector<1x64x128xbf16> to vector<64x128xbf16>
    %cst_22 = arith.constant dense<0.000000e+00> : vector<32x128xf32>
    %38 = tpu.matmul %0, %37, %cst_22 {dimension_numbers = #tpu.dot_dimension_numbers<[1], [0], [0], [1], [0, 0, 1, 1], [], []>} : vector<32x64xbf16>, vector<64x128xbf16>, vector<32x128xf32> -> vector<32x128xf32>
    %39 = vector.broadcast %1 : vector<32x1xf32> to vector<32x128xf32>
    %40 = arith.addf %38, %39 : vector<32x128xf32>
    %41 = vector.extract_strided_slice %40 {offsets = [0, 0], sizes = [16, 128], strides = [1, 1]} : vector<32x128xf32> to vector<16x128xf32>
    %cst_23 = arith.constant -1.000000e+01 : f32
    %cst_24 = arith.constant 1.000000e+01 : f32
    %42 = vector.broadcast %cst_23 : f32 to vector<16x128xf32>
    %43 = arith.maximumf %42, %41 : vector<16x128xf32>
    %44 = vector.broadcast %cst_24 : f32 to vector<16x128xf32>
    %45 = arith.minimumf %44, %43 : vector<16x128xf32>
    %46 = vector.extract_strided_slice %40 {offsets = [16, 0], sizes = [16, 128], strides = [1, 1]} : vector<32x128xf32> to vector<16x128xf32>
    %47 = math.exp %45 : vector<16x128xf32>
    %cst_25 = arith.constant dense<0.000000e+00> : vector<16xf32>
    %48 = vector.multi_reduction <add>, %47, %cst_25 [1] : vector<16x128xf32> to vector<16xf32>
    %49 = vector.shape_cast %48 : vector<16xf32> to vector<16x1xf32>
    %50 = tpu.reciprocal %49 {approx = true} : vector<16x1xf32> -> vector<16x1xf32>
    %51 = vector.broadcast %50 : vector<16x1xf32> to vector<16x128xf32>
    %52 = arith.mulf %47, %51 : vector<16x128xf32>
    %53 = arith.negf %46 : vector<16x128xf32>
    %54 = math.exp %53 : vector<16x128xf32>
    %cst_26 = arith.constant 1.000000e+00 : f32
    %55 = vector.broadcast %cst_26 : f32 to vector<16x128xf32>
    %56 = arith.addf %55, %54 : vector<16x128xf32>
    %57 = arith.divf %55, %56 : vector<16x128xf32>
    %58 = arith.mulf %52, %57 : vector<16x128xf32>
    %cst_27 = arith.constant dense<0.000000e+00> : vector<16xf32>
    %59 = vector.multi_reduction <add>, %58, %cst_27 [1] : vector<16x128xf32> to vector<16xf32>
    %60 = vector.shape_cast %59 : vector<16xf32> to vector<16x1xf32>
    %c1_28 = arith.constant 1 : index
    %c0_29 = arith.constant 0 : index
    %c0_30 = arith.constant 0 : index
    %61 = vector.load %arg5[%c1_28, %c0_29, %c0_30] : memref<4x16x128xf32, #tpu.memory_space<vmem>>, vector<1x16x128xf32>
    %62 = vector.shape_cast %61 : vector<1x16x128xf32> to vector<16x128xf32>
    %63 = vector.shape_cast %52 : vector<16x128xf32> to vector<1x16x128xf32>
    tpu.vector_store %arg5[%c1_28, %c0_29, %c0_30], %63 {strides = array<i32>} : memref<4x16x128xf32, #tpu.memory_space<vmem>>, vector<1x16x128xf32>,
    %c1_31 = arith.constant 1 : index
    %c0_32 = arith.constant 0 : index
    %c0_33 = arith.constant 0 : index
    %64 = vector.load %arg6[%c1_31, %c0_32, %c0_33] : memref<4x16x128xf32, #tpu.memory_space<vmem>>, vector<1x16x128xf32>
    %65 = vector.shape_cast %64 : vector<1x16x128xf32> to vector<16x128xf32>
    %66 = vector.shape_cast %57 : vector<16x128xf32> to vector<1x16x128xf32>
    tpu.vector_store %arg6[%c1_31, %c0_32, %c0_33], %66 {strides = array<i32>} : memref<4x16x128xf32, #tpu.memory_space<vmem>>, vector<1x16x128xf32>,
    %c1_34 = arith.constant 1 : index
    %c0_35 = arith.constant 0 : index
    %c0_36 = arith.constant 0 : index
    %67 = vector.load %arg4[%c1_34, %c0_35, %c0_36] : memref<4x16x1xf32, #tpu.memory_space<vmem>>, vector<1x16x1xf32>
    %68 = vector.shape_cast %67 : vector<1x16x1xf32> to vector<16x1xf32>
    %69 = vector.shape_cast %60 : vector<16x1xf32> to vector<1x16x1xf32>
    tpu.vector_store %arg4[%c1_34, %c0_35, %c0_36], %69 {strides = array<i32>} : memref<4x16x1xf32, #tpu.memory_space<vmem>>, vector<1x16x1xf32>,
    %c2 = arith.constant 2 : index
    %c0_37 = arith.constant 0 : index
    %c0_38 = arith.constant 0 : index
    %70 = vector.load %arg1[%c2, %c0_37, %c0_38] : memref<4x64x128xbf16, #tpu.memory_space<vmem>>, vector<1x64x128xbf16>
    %71 = vector.shape_cast %70 : vector<1x64x128xbf16> to vector<64x128xbf16>
    %cst_39 = arith.constant dense<0.000000e+00> : vector<32x128xf32>
    %72 = tpu.matmul %0, %71, %cst_39 {dimension_numbers = #tpu.dot_dimension_numbers<[1], [0], [0], [1], [0, 0, 1, 1], [], []>} : vector<32x64xbf16>, vector<64x128xbf16>, vector<32x128xf32> -> vector<32x128xf32>
    %73 = vector.broadcast %1 : vector<32x1xf32> to vector<32x128xf32>
    %74 = arith.addf %72, %73 : vector<32x128xf32>
    %75 = vector.extract_strided_slice %74 {offsets = [0, 0], sizes = [16, 128], strides = [1, 1]} : vector<32x128xf32> to vector<16x128xf32>
    %cst_40 = arith.constant -1.000000e+01 : f32
    %cst_41 = arith.constant 1.000000e+01 : f32
    %76 = vector.broadcast %cst_40 : f32 to vector<16x128xf32>
    %77 = arith.maximumf %76, %75 : vector<16x128xf32>
    %78 = vector.broadcast %cst_41 : f32 to vector<16x128xf32>
    %79 = arith.minimumf %78, %77 : vector<16x128xf32>
    %80 = vector.extract_strided_slice %74 {offsets = [16, 0], sizes = [16, 128], strides = [1, 1]} : vector<32x128xf32> to vector<16x128xf32>
    %81 = math.exp %79 : vector<16x128xf32>
    %cst_42 = arith.constant dense<0.000000e+00> : vector<16xf32>
    %82 = vector.multi_reduction <add>, %81, %cst_42 [1] : vector<16x128xf32> to vector<16xf32>
    %83 = vector.shape_cast %82 : vector<16xf32> to vector<16x1xf32>
    %84 = tpu.reciprocal %83 {approx = true} : vector<16x1xf32> -> vector<16x1xf32>
    %85 = vector.broadcast %84 : vector<16x1xf32> to vector<16x128xf32>
    %86 = arith.mulf %81, %85 : vector<16x128xf32>
    %87 = arith.negf %80 : vector<16x128xf32>
    %88 = math.exp %87 : vector<16x128xf32>
    %cst_43 = arith.constant 1.000000e+00 : f32
    %89 = vector.broadcast %cst_43 : f32 to vector<16x128xf32>
    %90 = arith.addf %89, %88 : vector<16x128xf32>
    %91 = arith.divf %89, %90 : vector<16x128xf32>
    %92 = arith.mulf %86, %91 : vector<16x128xf32>
    %cst_44 = arith.constant dense<0.000000e+00> : vector<16xf32>
    %93 = vector.multi_reduction <add>, %92, %cst_44 [1] : vector<16x128xf32> to vector<16xf32>
    %94 = vector.shape_cast %93 : vector<16xf32> to vector<16x1xf32>
    %c2_45 = arith.constant 2 : index
    %c0_46 = arith.constant 0 : index
    %c0_47 = arith.constant 0 : index
    %95 = vector.load %arg5[%c2_45, %c0_46, %c0_47] : memref<4x16x128xf32, #tpu.memory_space<vmem>>, vector<1x16x128xf32>
    %96 = vector.shape_cast %95 : vector<1x16x128xf32> to vector<16x128xf32>
    %97 = vector.shape_cast %86 : vector<16x128xf32> to vector<1x16x128xf32>
    tpu.vector_store %arg5[%c2_45, %c0_46, %c0_47], %97 {strides = array<i32>} : memref<4x16x128xf32, #tpu.memory_space<vmem>>, vector<1x16x128xf32>,
    %c2_48 = arith.constant 2 : index
    %c0_49 = arith.constant 0 : index
    %c0_50 = arith.constant 0 : index
    %98 = vector.load %arg6[%c2_48, %c0_49, %c0_50] : memref<4x16x128xf32, #tpu.memory_space<vmem>>, vector<1x16x128xf32>
    %99 = vector.shape_cast %98 : vector<1x16x128xf32> to vector<16x128xf32>
    %100 = vector.shape_cast %91 : vector<16x128xf32> to vector<1x16x128xf32>
    tpu.vector_store %arg6[%c2_48, %c0_49, %c0_50], %100 {strides = array<i32>} : memref<4x16x128xf32, #tpu.memory_space<vmem>>, vector<1x16x128xf32>,
    %c2_51 = arith.constant 2 : index
    %c0_52 = arith.constant 0 : index
    %c0_53 = arith.constant 0 : index
    %101 = vector.load %arg4[%c2_51, %c0_52, %c0_53] : memref<4x16x1xf32, #tpu.memory_space<vmem>>, vector<1x16x1xf32>
    %102 = vector.shape_cast %101 : vector<1x16x1xf32> to vector<16x1xf32>
    %103 = vector.shape_cast %94 : vector<16x1xf32> to vector<1x16x1xf32>
    tpu.vector_store %arg4[%c2_51, %c0_52, %c0_53], %103 {strides = array<i32>} : memref<4x16x1xf32, #tpu.memory_space<vmem>>, vector<1x16x1xf32>,
    %c3 = arith.constant 3 : index
    %c0_54 = arith.constant 0 : index
    %c0_55 = arith.constant 0 : index
    %104 = vector.load %arg1[%c3, %c0_54, %c0_55] : memref<4x64x128xbf16, #tpu.memory_space<vmem>>, vector<1x64x128xbf16>
    %105 = vector.shape_cast %104 : vector<1x64x128xbf16> to vector<64x128xbf16>
    %cst_56 = arith.constant dense<0.000000e+00> : vector<32x128xf32>
    %106 = tpu.matmul %0, %105, %cst_56 {dimension_numbers = #tpu.dot_dimension_numbers<[1], [0], [0], [1], [0, 0, 1, 1], [], []>} : vector<32x64xbf16>, vector<64x128xbf16>, vector<32x128xf32> -> vector<32x128xf32>
    %107 = vector.broadcast %1 : vector<32x1xf32> to vector<32x128xf32>
    %108 = arith.addf %106, %107 : vector<32x128xf32>
    %109 = vector.extract_strided_slice %108 {offsets = [0, 0], sizes = [16, 128], strides = [1, 1]} : vector<32x128xf32> to vector<16x128xf32>
    %cst_57 = arith.constant -1.000000e+01 : f32
    %cst_58 = arith.constant 1.000000e+01 : f32
    %110 = vector.broadcast %cst_57 : f32 to vector<16x128xf32>
    %111 = arith.maximumf %110, %109 : vector<16x128xf32>
    %112 = vector.broadcast %cst_58 : f32 to vector<16x128xf32>
    %113 = arith.minimumf %112, %111 : vector<16x128xf32>
    %114 = vector.extract_strided_slice %108 {offsets = [16, 0], sizes = [16, 128], strides = [1, 1]} : vector<32x128xf32> to vector<16x128xf32>
    %115 = math.exp %113 : vector<16x128xf32>
    %cst_59 = arith.constant dense<0.000000e+00> : vector<16xf32>
    %116 = vector.multi_reduction <add>, %115, %cst_59 [1] : vector<16x128xf32> to vector<16xf32>
    %117 = vector.shape_cast %116 : vector<16xf32> to vector<16x1xf32>
    %118 = tpu.reciprocal %117 {approx = true} : vector<16x1xf32> -> vector<16x1xf32>
    %119 = vector.broadcast %118 : vector<16x1xf32> to vector<16x128xf32>
    %120 = arith.mulf %115, %119 : vector<16x128xf32>
    %121 = arith.negf %114 : vector<16x128xf32>
    %122 = math.exp %121 : vector<16x128xf32>
    %cst_60 = arith.constant 1.000000e+00 : f32
    %123 = vector.broadcast %cst_60 : f32 to vector<16x128xf32>
    %124 = arith.addf %123, %122 : vector<16x128xf32>
    %125 = arith.divf %123, %124 : vector<16x128xf32>
    %126 = arith.mulf %120, %125 : vector<16x128xf32>
    %cst_61 = arith.constant dense<0.000000e+00> : vector<16xf32>
    %127 = vector.multi_reduction <add>, %126, %cst_61 [1] : vector<16x128xf32> to vector<16xf32>
    %128 = vector.shape_cast %127 : vector<16xf32> to vector<16x1xf32>
    %c3_62 = arith.constant 3 : index
    %c0_63 = arith.constant 0 : index
    %c0_64 = arith.constant 0 : index
    %129 = vector.load %arg5[%c3_62, %c0_63, %c0_64] : memref<4x16x128xf32, #tpu.memory_space<vmem>>, vector<1x16x128xf32>
    %130 = vector.shape_cast %129 : vector<1x16x128xf32> to vector<16x128xf32>
    %131 = vector.shape_cast %120 : vector<16x128xf32> to vector<1x16x128xf32>
    tpu.vector_store %arg5[%c3_62, %c0_63, %c0_64], %131 {strides = array<i32>} : memref<4x16x128xf32, #tpu.memory_space<vmem>>, vector<1x16x128xf32>,
    %c3_65 = arith.constant 3 : index
    %c0_66 = arith.constant 0 : index
    %c0_67 = arith.constant 0 : index
    %132 = vector.load %arg6[%c3_65, %c0_66, %c0_67] : memref<4x16x128xf32, #tpu.memory_space<vmem>>, vector<1x16x128xf32>
    %133 = vector.shape_cast %132 : vector<1x16x128xf32> to vector<16x128xf32>
    %134 = vector.shape_cast %125 : vector<16x128xf32> to vector<1x16x128xf32>
    tpu.vector_store %arg6[%c3_65, %c0_66, %c0_67], %134 {strides = array<i32>} : memref<4x16x128xf32, #tpu.memory_space<vmem>>, vector<1x16x128xf32>,
    %c3_68 = arith.constant 3 : index
    %c0_69 = arith.constant 0 : index
    %c0_70 = arith.constant 0 : index
    %135 = vector.load %arg4[%c3_68, %c0_69, %c0_70] : memref<4x16x1xf32, #tpu.memory_space<vmem>>, vector<1x16x1xf32>
    %136 = vector.shape_cast %135 : vector<1x16x1xf32> to vector<16x1xf32>
    %137 = vector.shape_cast %128 : vector<16x1xf32> to vector<1x16x1xf32>
    tpu.vector_store %arg4[%c3_68, %c0_69, %c0_70], %137 {strides = array<i32>} : memref<4x16x1xf32, #tpu.memory_space<vmem>>, vector<1x16x1xf32>,
    return
  }
  func.func @transform_0(%arg0: i32) -> (i32, i32, i32) {
    %c0_i32 = arith.constant 0 : i32
    %c0_i32_0 = arith.constant 0 : i32
    %c0_i32_1 = arith.constant 0 : i32
    return %arg0, %c0_i32, %c0_i32_0 : i32, i32, i32
  }
  func.func @transform_1(%arg0: i32) -> (i32, i32) {
    %c0_i32 = arith.constant 0 : i32
    %c0_i32_0 = arith.constant 0 : i32
    %c0_i32_1 = arith.constant 0 : i32
    return %c0_i32, %c0_i32_0 : i32, i32
  }
  func.func @transform_2(%arg0: i32) -> (i32, i32) {
    %c0_i32 = arith.constant 0 : i32
    %c0_i32_0 = arith.constant 0 : i32
    %c0_i32_1 = arith.constant 0 : i32
    return %c0_i32, %c0_i32_0 : i32, i32
  }
  func.func @transform_3(%arg0: i32) -> (i32, i32, i32) {
    %c0_i32 = arith.constant 0 : i32
    %c0_i32_0 = arith.constant 0 : i32
    %c0_i32_1 = arith.constant 0 : i32
    return %arg0, %c0_i32, %c0_i32_0 : i32, i32, i32
  }
  func.func @transform_4(%arg0: i32) -> (i32, i32, i32) {
    %c0_i32 = arith.constant 0 : i32
    %c0_i32_0 = arith.constant 0 : i32
    %c0_i32_1 = arith.constant 0 : i32
    return %arg0, %c0_i32, %c0_i32_0 : i32, i32, i32
  }
  func.func @transform_5(%arg0: i32) -> (i32, i32, i32) {
    %c0_i32 = arith.constant 0 : i32
    %c0_i32_0 = arith.constant 0 : i32
    %c0_i32_1 = arith.constant 0 : i32
    return %arg0, %c0_i32, %c0_i32_0 : i32, i32, i32
  }
}

</mosaic_0001>

<llo_original>
// kernel: tpu_custom_call.1
$region0: #{tpu_custom_call.1}
  #allocation0 [shape = 'u32[]', space=smem, size = 0x4, offset = 0x4, fixed_abs, tag = 'smem constant byte address 0x4 - core index']
  #allocation1 [shape = 'u32[144,128]{1,0:T(1,128)}', space=vmem, size = 0x12000, scoped, tag = 'internal scratch']
  %s0 = inlined_call_operand.hbm [shape: bf16[8,64,128], index: 0, kind: input, shape index: {}]
  %s1 = inlined_call_operand.vmem [shape: bf16[32,64], index: 1, kind: input, shape index: {}]
  %s2 = inlined_call_operand.vmem [shape: f32[32,1], index: 2, kind: input, shape index: {}]
  %s3 = inlined_call_operand.vmem [shape: f32[8,16,1], index: 3, kind: output, shape index: {0}]
  %s4 = inlined_call_operand.hbm [shape: f32[8,16,128], index: 4, kind: output, shape index: {1}]
  %s5 = inlined_call_operand.hbm [shape: f32[8,16,128], index: 5, kind: output, shape index: {2}]
  %6 = xla_tuple %s3, %s4, %s5
  %s7 = sld [smem:[#allocation0]]
  $region65: #{tpu_custom_call.1} parent=0
    _
  %s9 = ssub.s32 1, %s7
  %s10 = scalar_select 0, %s9, %s7
  $region1: #{tpu_custom_call.1} parent=0
    #allocation2 [shape = 'u8[131072]{0}', space=vmem, size = 0x20000, scoped, tag = 'input window, operand 0']
    #allocation3 [shape = 's32[2]{0}', space=sflag, size = 0x8, scoped, tag = 'scoped memory for tpu_custom_call.1']
    #allocation4 [shape = 's32[2]{0}', space=sflag, size = 0x8, scoped, tag = 'scoped memory for tpu_custom_call.1']
    #allocation5 [shape = 'u8[65536]{0}', space=vmem, size = 0x10000, scoped, tag = 'output window, operand 1']
    #allocation6 [shape = 'u8[65536]{0}', space=vmem, size = 0x10000, scoped, tag = 'output window, operand 2']
    #allocation7 [shape = 's32[2]{0}', space=sflag, size = 0x8, scoped, tag = 'scoped memory for tpu_custom_call.1']
    %11 = vsyncpa [#allocation3], 0
    %s12 = scalar_lea.sflag [#allocation3], 1
    %13 = vsyncpa %s12, 0
    %14 = vsyncpa [#allocation4], 0
    %s15 = scalar_lea.sflag [#allocation4], 1
    %16 = vsyncpa %s15, 0
    %17 = vsyncpa [#allocation7], 0
    %s18 = scalar_lea.sflag [#allocation7], 1
    %19 = vsyncpa %s18, 0
    loop: start=0, step=1, limit=4
    $region2: #{tpu_custom_call.1} parent=1 // loop_pre_header
      _
    $region3: #{tpu_custom_call.1} parent=1 // loop_header
      %s21 = sphi 0, %s25
      %p22 = scmp.ge.s32.totalorder %s21, 4
      %s31 = sphi 0, %s33
      %s34 = sphi 0, %s31
      %s35 = sphi 0, %s34
      %s51 = sphi 0, %s35
      %s55 = sphi 0, %s55
      %s57 = sphi 0, %s55
      %s58 = sphi 0, %s57
      %s72 = sphi 0, %s58
      %s76 = sphi 0, %s76
      %s78 = sphi 0, %s76
      %s79 = sphi 0, %s78
      %s93 = sphi 0, %s79
      %s99 = sphi 0, %s101
      %s102 = sphi 0, %s99
      %s103 = sphi 0, %s102
      %s119 = sphi 0, %s103
      %s125 = sphi 0, %s127
      %s128 = sphi 0, %s125
      %s129 = sphi 0, %s128
      %s145 = sphi 0, %s129
      %s151 = sphi 0, %s153
      %s154 = sphi 0, %s151
      %s155 = sphi 0, %s154
      %s171 = sphi 0, %s155
    $region4: #{tpu_custom_call.1} parent=1 // loop_header_branch
      %24 = sbr.rel (%p22) target = $region8
    $region5: #{tpu_custom_call.1} parent=1 // loop_body
      %s26 = ssub.s32 %s21, 1
      %s27 = ssub.s32 %s21, 2
      %s28 = sadd.s32 %s21, 1
      %s29 = ssub.s32 %s21, %s28
      %p30 = scmp.eq.s32.totalorder %s29, 0
      %s32 = sadd.s32 %s31, 1
      %s33 = scalar_select %p30, %s31, %s32
      %p36 = pneg %p30
      %p37 = scmp.eq.s32.totalorder %s21, 1
      %p38 = por %p36, %p37
      %p39 = scmp.ne.s32.totalorder %s31, %s34
      %p40 = scmp.eq.s32.totalorder %s21, 0
      %p41 = por %p39, %p40
      %p42 = scmp.ne.s32.totalorder %s31, %s34
      %p43 = scmp.eq.s32.totalorder %s26, 1
      %p44 = por %p42, %p43
      %p45 = scmp.ne.s32.totalorder %s34, %s35
      %p46 = scmp.eq.s32.totalorder %s26, 0
      %p47 = por %p45, %p46
      %p48 = scmp.ne.s32.totalorder %s34, %s35
      %p49 = scmp.eq.s32.totalorder %s27, 1
      %p50 = por %p48, %p49
      %p52 = scmp.ne.s32.totalorder %s35, %s51
      %p53 = scmp.eq.s32.totalorder %s27, 0
      %p54 = por %p52, %p53
      %s56 = sadd.s32 %s55, 1
      %p59 = scmp.eq.s32.totalorder %s21, 1
      %p60 = scmp.ne.s32.totalorder %s55, %s57
      %p61 = scmp.eq.s32.totalorder %s21, 0
      %p62 = por %p60, %p61
      %p63 = scmp.ne.s32.totalorder %s55, %s57
      %p64 = scmp.eq.s32.totalorder %s26, 1
      %p65 = por %p63, %p64
      %p66 = scmp.ne.s32.totalorder %s57, %s58
      %p67 = scmp.eq.s32.totalorder %s26, 0
      %p68 = por %p66, %p67
      %p69 = scmp.ne.s32.totalorder %s57, %s58
      %p70 = scmp.eq.s32.totalorder %s27, 1
      %p71 = por %p69, %p70
      %p73 = scmp.ne.s32.totalorder %s58, %s72
      %p74 = scmp.eq.s32.totalorder %s27, 0
      %p75 = por %p73, %p74
      %s77 = sadd.s32 %s76, 1
      %p80 = scmp.eq.s32.totalorder %s21, 1
      %p81 = scmp.ne.s32.totalorder %s76, %s78
      %p82 = scmp.eq.s32.totalorder %s21, 0
      %p83 = por %p81, %p82
      %p84 = scmp.ne.s32.totalorder %s76, %s78
      %p85 = scmp.eq.s32.totalorder %s26, 1
      %p86 = por %p84, %p85
      %p87 = scmp.ne.s32.totalorder %s78, %s79
      %p88 = scmp.eq.s32.totalorder %s26, 0
      %p89 = por %p87, %p88
      %p90 = scmp.ne.s32.totalorder %s78, %s79
      %p91 = scmp.eq.s32.totalorder %s27, 1
      %p92 = por %p90, %p91
      %p94 = scmp.ne.s32.totalorder %s79, %s93
      %p95 = scmp.eq.s32.totalorder %s27, 0
      %p96 = por %p94, %p95
      %s97 = ssub.s32 %s21, %s28
      %p98 = scmp.eq.s32.totalorder %s97, 0
      %s100 = sadd.s32 %s99, 1
      %s101 = scalar_select %p98, %s99, %s100
      %p104 = pneg %p98
      %p105 = scmp.eq.s32.totalorder %s21, 1
      %p106 = por %p104, %p105
      %p107 = scmp.ne.s32.totalorder %s99, %s102
      %p108 = scmp.eq.s32.totalorder %s21, 0
      %p109 = por %p107, %p108
      %p110 = scmp.ne.s32.totalorder %s99, %s102
      %p111 = scmp.eq.s32.totalorder %s26, 1
      %p112 = por %p110, %p111
      %p113 = scmp.ne.s32.totalorder %s102, %s103
      %p114 = scmp.eq.s32.totalorder %s26, 0
      %p115 = por %p113, %p114
      %p116 = scmp.ne.s32.totalorder %s102, %s103
      %p117 = scmp.eq.s32.totalorder %s27, 1
      %p118 = por %p116, %p117
      %p120 = scmp.ne.s32.totalorder %s103, %s119
      %p121 = scmp.eq.s32.totalorder %s27, 0
      %p122 = por %p120, %p121
      %s123 = ssub.s32 %s21, %s28
      %p124 = scmp.eq.s32.totalorder %s123, 0
      %s126 = sadd.s32 %s125, 1
      %s127 = scalar_select %p124, %s125, %s126
      %p130 = pneg %p124
      %p131 = scmp.eq.s32.totalorder %s21, 1
      %p132 = por %p130, %p131
      %p133 = scmp.ne.s32.totalorder %s125, %s128
      %p134 = scmp.eq.s32.totalorder %s21, 0
      %p135 = por %p133, %p134
      %p136 = scmp.ne.s32.totalorder %s125, %s128
      %p137 = scmp.eq.s32.totalorder %s26, 1
      %p138 = por %p136, %p137
      %p139 = scmp.ne.s32.totalorder %s128, %s129
      %p140 = scmp.eq.s32.totalorder %s26, 0
      %p141 = por %p139, %p140
      %p142 = scmp.ne.s32.totalorder %s128, %s129
      %p143 = scmp.eq.s32.totalorder %s27, 1
      %p144 = por %p142, %p143
      %p146 = scmp.ne.s32.totalorder %s129, %s145
      %p147 = scmp.eq.s32.totalorder %s27, 0
      %p148 = por %p146, %p147
      %s149 = ssub.s32 %s21, %s28
      %p150 = scmp.eq.s32.totalorder %s149, 0
      %s152 = sadd.s32 %s151, 1
      %s153 = scalar_select %p150, %s151, %s152
      %p156 = pneg %p150
      %p157 = scmp.eq.s32.totalorder %s21, 1
      %p158 = por %p156, %p157
      %p159 = scmp.ne.s32.totalorder %s151, %s154
      %p160 = scmp.eq.s32.totalorder %s21, 0
      %p161 = por %p159, %p160
      %p162 = scmp.ne.s32.totalorder %s151, %s154
      %p163 = scmp.eq.s32.totalorder %s26, 1
      %p164 = por %p162, %p163
      %p165 = scmp.ne.s32.totalorder %s154, %s155
      %p166 = scmp.eq.s32.totalorder %s26, 0
      %p167 = por %p165, %p166
      %p168 = scmp.ne.s32.totalorder %s154, %s155
      %p169 = scmp.eq.s32.totalorder %s27, 1
      %p170 = por %p168, %p169
      %p172 = scmp.ne.s32.totalorder %s155, %s171
      %p173 = scmp.eq.s32.totalorder %s27, 0
      %p174 = por %p172, %p173
      %p175 = scmp.le.s32.totalorder 1, %s21
      %p176 = scmp.lt.s32.totalorder %s21, 3
      %p177 = pnand %p175, %p176
      %p178 = pneg %p177
      // Predicated region
      $region9: #{tpu_custom_call.1} parent=5 // pred_check
        _
      $region10: #{tpu_custom_call.1} parent=5 // pred_check_branch
        %180 = sbr.rel (%p177) target = $region12
      $region11: #{tpu_custom_call.1} parent=5 // pred_region
        %s181 = ssub.s32 %s21, 1
        // Predicated region
        $region13: #{tpu_custom_call.1} parent=11 // pred_check
          %p182 = pneg %p68
        $region14: #{tpu_custom_call.1} parent=11 // pred_check_branch
          %184 = sbr.rel (%p182) target = $region16
        $region15: #{tpu_custom_call.1} parent=11 // pred_region
          _
        $region16: #{tpu_custom_call.1} parent=11 // pred_fallthru
          _
        // Predicated region
        $region17: #{tpu_custom_call.1} parent=11 // pred_check
          %p185 = pneg %p89
        $region18: #{tpu_custom_call.1} parent=11 // pred_check_branch
          %187 = sbr.rel (%p185) target = $region20
        $region19: #{tpu_custom_call.1} parent=11 // pred_region
          _
        $region20: #{tpu_custom_call.1} parent=11 // pred_fallthru
          _
      $region12: #{tpu_custom_call.1} parent=5 // pred_fallthru
        _
      %p188 = scmp.lt.s32.totalorder %s21, 2
      // Predicated region
      $region21: #{tpu_custom_call.1} parent=5 // pred_check
        %p189 = pneg %p188
      $region22: #{tpu_custom_call.1} parent=5 // pred_check_branch
        %191 = sbr.rel (%p189) target = $region24
      $region23: #{tpu_custom_call.1} parent=5 // pred_region
        // Predicated region
        $region25: #{tpu_custom_call.1} parent=23 // pred_check
          %p192 = pneg %p41
        $region26: #{tpu_custom_call.1} parent=23 // pred_check_branch
          %194 = sbr.rel (%p192) target = $region28
        $region27: #{tpu_custom_call.1} parent=23 // pred_region
          %s195 = sand.u32 %s31, 1
          %s196 = scalar_lea.sflag [#allocation3], %s195
          %s197 = sand.u32 %s31, 1
          %s198 = smul.addr %s197, 128
          %s199 = scalar_lea.vmem [#allocation2], %s198
          %s200 = smul.u32 4, %s21
          %s202 = ssub.s32 2048, 2048
          %203 = vsyncadd %s196, %s202
          %s204 = smul.addr %s200, 8
          %s205 = smul.addr %s204, 64
          %s206 = scalar_lea.hbm %s0, %s205
          %s207 = sshll.u32 %s199, 4
          %s208 = int_to_ptr.vmem [resolvable:$true] %s207
          %213 = dma.hbm_to_vmem [thread:$0]  %s206, 2048, %s208, %s196, 64, 64, 4
        $region28: #{tpu_custom_call.1} parent=23 // pred_fallthru
          _
      $region24: #{tpu_custom_call.1} parent=5 // pred_fallthru
        _
      %p214 = scmp.le.s32.totalorder 1, %s21
      %p215 = scmp.lt.s32.totalorder %s21, 3
      %p216 = pnand %p214, %p215
      %p217 = pneg %p216
      // Predicated region
      $region29: #{tpu_custom_call.1} parent=5 // pred_check
        _
      $region30: #{tpu_custom_call.1} parent=5 // pred_check_branch
        %219 = sbr.rel (%p216) target = $region32
      $region31: #{tpu_custom_call.1} parent=5 // pred_region
        %s220 = ssub.s32 %s21, 1
        %s221 = sand.u32 %s34, 1
        %s222 = scalar_lea.sflag [#allocation3], %s221
        %s223 = sand.u32 %s34, 1
        %s224 = smul.addr %s223, 128
        %s225 = scalar_lea.vmem [#allocation2], %s224
        // Predicated region
        $region33: #{tpu_custom_call.1} parent=31 // pred_check
          %p226 = pneg %p47
        $region34: #{tpu_custom_call.1} parent=31 // pred_check_branch
          %228 = sbr.rel (%p226) target = $region36
        $region35: #{tpu_custom_call.1} parent=31 // pred_region
          %229 = dma.done %s222, 2048
        $region36: #{tpu_custom_call.1} parent=31 // pred_fallthru
          _
        %s230 = sand.u32 %s34, 1
        %s231 = scalar_lea.sflag [#allocation3], %s230
        %s232 = sand.u32 %s34, 1
        %s233 = smul.addr %s232, 128
        %s234 = scalar_lea.vmem [#allocation2], %s233
        %p235 = pneg %p47
        %p236 = pneg %p44
        %p237 = pneg %p68
        %p238 = pneg %p65
        %p239 = pneg %p89
        %p240 = pneg %p86
        %p241 = pneg %p115
        %p242 = pneg %p112
        %s243 = smul.u32 4, %s26
        %p244 = scmp.lt.s32.totalorder %s243, 7
        %s245 = scalar_select %p244, %s243, 7
        %s246 = smul.addr %s245, 2
        %s247 = smul.addr %s246, 8
        %s248 = scalar_lea.vmem %s3, %s247
        %p249 = pneg %p141
        %p250 = pneg %p138
        %s251 = sand.u32 %s128, 1
        %s252 = scalar_lea.sflag [#allocation4], %s251
        %s253 = sand.u32 %s128, 1
        %s254 = smul.addr %s253, 64
        %s255 = scalar_lea.vmem [#allocation5], %s254
        %p256 = pneg %p167
        %p257 = pneg %p164
        %s258 = sand.u32 %s154, 1
        %s259 = scalar_lea.sflag [#allocation7], %s258
        %s260 = sand.u32 %s154, 1
        %s261 = smul.addr %s260, 64
        %s262 = scalar_lea.vmem [#allocation6], %s261
        %s263 = smul.u32 4, %s26
        %s264 = smul.u32 4, %s26
        %p265 = scmp.lt.s32.totalorder %s264, 7
        %s266 = scalar_select %p265, %s264, 7
        %s267 = smul.addr %s266, 2
        %s268 = smul.addr %s267, 8
        %s269 = scalar_lea.vmem %s3, %s268
        %s270 = smul.u32 4, %s26
        %s271 = smul.u32 4, %s26
        %s272 = smul.u32 4, %s26
        %v274 = vld [vmem:[%s1] sm:$0xf]
        %v275 = vld [vmem:[%s1 + $0x4] sm:$0xf]
        %v276 = vld [vmem:[%s1 + $0x8] sm:$0xf]
        %v277 = vld [vmem:[%s1 + $0xc] sm:$0xf]
        %v278 = vld [vmem:[%s2] sm:$0xff]
        %v279 = vld [vmem:[%s2 + $0x8] sm:$0xff]
        %v280 = vld [vmem:[%s2 + $0x10] sm:$0xff]
        %v281 = vld [vmem:[%s2 + $0x18] sm:$0xff]
        %v282 = vld [vmem:[%s225] sm:$0xf]
        %v283 = vld [vmem:[%s225 + $0x4] sm:$0xf]
        %v284 = vld [vmem:[%s225 + $0x8] sm:$0xf]
        %v285 = vld [vmem:[%s225 + $0xc] sm:$0xf]
        %v286 = vld [vmem:[%s225 + $0x10] sm:$0xf]
        %v287 = vld [vmem:[%s225 + $0x14] sm:$0xf]
        %v288 = vld [vmem:[%s225 + $0x18] sm:$0xf]
        %v289 = vld [vmem:[%s225 + $0x1c] sm:$0xf]
        %291 = vset.pattern.permute.xlu0 0
        %292 = vperm.xlu0 %291, %v278
        %v293 = vpop.permute.xlu0 %292
        %296 = vset.pattern.permute.xlu0 0
        %297 = vperm.xlu0 %296, %v279
        %v298 = vpop.permute.xlu0 %297
        %301 = vset.pattern.permute.xlu0 0
        %302 = vperm.xlu0 %301, %v280
        %v303 = vpop.permute.xlu0 %302
        %306 = vset.pattern.permute.xlu0 0
        %307 = vperm.xlu0 %306, %v281
        %v308 = vpop.permute.xlu0 %307
        %v314 = vunpack.c.l.b16 %v274
        %v315 = vunpack.c.l.b16 %v275
        %v316 = vunpack.c.l.b16 %v276
        %v317 = vunpack.c.l.b16 %v277
        %v318 = vpack.c.b16 %v315, %v314
        %v319 = vpack.c.b16 %v317, %v316
        %v328 = vunpack.c.l.b16 %v282
        %v329 = vunpack.c.l.b16 %v283
        %v330 = vunpack.c.l.b16 %v284
        %v331 = vunpack.c.l.b16 %v285
        %v332 = vunpack.c.l.b16 %v286
        %v333 = vunpack.c.l.b16 %v287
        %v334 = vunpack.c.l.b16 %v288
        %v335 = vunpack.c.l.b16 %v289
        %v336 = vpack.c.b16 %v329, %v328
        %v337 = vpack.c.b16 %v331, %v330
        %v338 = vpack.c.b16 %v333, %v332
        %v339 = vpack.c.b16 %v335, %v334
        %vm344 = vcmask 523264
        %v346 = vsel %vm344, %v318, 0
        %v349 = vsel %vm344, %v319, 0
        %351 = vmatprep.subr.bf16.mxu0 0
        %352 = vmatpush1.bf16.msra.mxu0 %v336
        %353 = vmatprep.subr.bf16.mxu0 0
        %354 = vmatpush1.bf16.msra.mxu0 %v337
        %355 = vmatprep.subr.bf16.mxu0 0
        %356 = vmatpush1.bf16.msra.mxu0 %v338
        %357 = vmatprep.subr.bf16.mxu0 0
        %358 = vmatpush1.bf16.msra.mxu0 %v339
        %359 = vmatprep.subr.bf16.mxu0 0
        %360 = vmatpush1.bf16.msra.mxu0 0
        %361 = vmatprep.subr.bf16.mxu0 0
        %362 = vmatpush1.bf16.msra.mxu0 0
        %363 = vmatprep.subr.bf16.mxu0 0
        %364 = vmatpush1.bf16.msra.mxu0 0
        %365 = vmatprep.subr.bf16.mxu0 0
        %366 = vmatpush1.bf16.msra.mxu0 0
        %367 = vmatprep.subr.bf16.mxu0 0
        %368 = vmatpush1.bf16.msra.mxu0 0
        %369 = vmatprep.subr.bf16.mxu0 0
        %370 = vmatpush1.bf16.msra.mxu0 0
        %371 = vmatprep.subr.bf16.mxu0 0
        %372 = vmatpush1.bf16.msra.mxu0 0
        %373 = vmatprep.subr.bf16.mxu0 0
        %374 = vmatpush1.bf16.msra.mxu0 0
        %375 = vmatprep.subr.bf16.mxu0 0
        %376 = vmatpush1.bf16.msra.mxu0 0
        %377 = vmatprep.subr.bf16.mxu0 0
        %378 = vmatpush1.bf16.msra.mxu0 0
        %379 = vmatprep.subr.bf16.mxu0 0
        %380 = vmatpush1.bf16.msra.mxu0 0
        %381 = vmatprep.subr.bf16.mxu0 0
        %382 = vmatpush1.bf16.msra.mxu0 0
        %383 = vmatprep.mubr.bf16.mxu0 0
        %384 = vmatmul.mubr.bf16.gmra.mrb[0].mxu0 %v346
        %v385 = vpop.f32.mrb[0].mxu0
        %v386 = vadd.f32 %v293, %v385
        %v387 = vpop.f32.mrb[0].mxu0
        %v388 = vpop.f32.mrb[0].mxu0
        %v389 = vadd.f32 %v298, %v388
        %v390 = vpop.f32.mrb[0].mxu0
        %391 = vmatprep.mubr.bf16.mxu0 0
        %392 = vmatmul.mubr.bf16.gmra.mrb[0].mxu0 %v349
        %v393 = vpop.f32.mrb[0].mxu0
        %v394 = vadd.f32 %v303, %v393
        %v395 = vpop.f32.mrb[0].mxu0
        %v396 = vpop.f32.mrb[0].mxu0
        %v397 = vadd.f32 %v308, %v396
        %v398 = vpop.f32.mrb[0].mxu0
        %399 = vdwg.mxu0
        %v400 = vmax.f32 %v386, -10.0
        %v401 = vmax.f32 %v389, -10.0
        %v402 = vmin.f32 %v400, 10.0
        %v403 = vmin.f32 %v401, 10.0
        %v404 = vmul.f32 %v402, 1.442695
        %v405 = vpow.pop %v404
        %v406 = vmul.f32 %v403, 1.442695
        %v407 = vpow.pop %v406
        %408 = vadd.xlane.f32.xlu0 %v405
        %v409 = vpop.xlane.xlu0 %408
        %410 = vadd.xlane.f32.xlu0 %v407
        %v411 = vpop.xlane.xlu0 %410
        %v412 = vrcp.pop %v409
        %v413 = vrcp.pop %v411
        %v414 = vmul.f32 %v405, %v412
        %v415 = vmul.f32 %v407, %v413
        %v416 = vxor.u32 %v394, 2147483648
        %v417 = vxor.u32 %v397, 2147483648
        %v418 = vmul.f32 %v416, 1.442695
        %v419 = vpow.pop %v418
        %v420 = vmul.f32 %v417, 1.442695
        %v421 = vpow.pop %v420
        %v422 = vadd.f32 %v419, 1.0
        %v423 = vadd.f32 %v421, 1.0
        %v424 = vrcp.pop %v422
        %v425 = vmul.f32 1.0, %v424
        %v426 = vrcp.pop %v423
        %v427 = vmul.f32 1.0, %v426
        %v428 = vmul.f32 %v414, %v425
        %v429 = vmul.f32 %v415, %v427
        %430 = vadd.xlane.f32.xlu0 %v428
        %v431 = vpop.xlane.xlu0 %430
        %432 = vadd.xlane.f32.xlu0 %v429
        %v433 = vpop.xlane.xlu0 %432
        %434 = vst [vmem:[%s255] sm:$0xff] %v414
        %435 = vst [vmem:[%s255 + $0x8] sm:$0xff] %v415
        %436 = vst [vmem:[%s262] sm:$0xff] %v425
        %437 = vst [vmem:[%s262 + $0x8] sm:$0xff] %v427
        %vm438 = vcmask 7168
        %439 = vst.msk [vmem:[%s269] sm:$0xff] %vm438, %v431
        %440 = vst.msk [vmem:[%s269 + $0x8] sm:$0xff] %vm438, %v433
        %s441 = scalar_lea.vmem %s225, 32 [#allocation2]
        %v442 = vld [vmem:[%s441] sm:$0xf]
        %v443 = vld [vmem:[%s441 + $0x4] sm:$0xf]
        %v444 = vld [vmem:[%s441 + $0x8] sm:$0xf]
        %v445 = vld [vmem:[%s441 + $0xc] sm:$0xf]
        %v446 = vld [vmem:[%s441 + $0x10] sm:$0xf]
        %v447 = vld [vmem:[%s441 + $0x14] sm:$0xf]
        %v448 = vld [vmem:[%s441 + $0x18] sm:$0xf]
        %v449 = vld [vmem:[%s441 + $0x1c] sm:$0xf]
        %v458 = vunpack.c.l.b16 %v442
        %v459 = vunpack.c.l.b16 %v443
        %v460 = vunpack.c.l.b16 %v444
        %v461 = vunpack.c.l.b16 %v445
        %v462 = vunpack.c.l.b16 %v446
        %v463 = vunpack.c.l.b16 %v447
        %v464 = vunpack.c.l.b16 %v448
        %v465 = vunpack.c.l.b16 %v449
        %v466 = vpack.c.b16 %v459, %v458
        %v467 = vpack.c.b16 %v461, %v460
        %v468 = vpack.c.b16 %v463, %v462
        %v469 = vpack.c.b16 %v465, %v464
        %474 = vmatprep.subr.bf16.mxu0 0
        %475 = vmatpush1.bf16.msra.mxu0 %v466
        %476 = vmatprep.subr.bf16.mxu0 0
        %477 = vmatpush1.bf16.msra.mxu0 %v467
        %478 = vmatprep.subr.bf16.mxu0 0
        %479 = vmatpush1.bf16.msra.mxu0 %v468
        %480 = vmatprep.subr.bf16.mxu0 0
        %481 = vmatpush1.bf16.msra.mxu0 %v469
        %482 = vmatprep.subr.bf16.mxu0 0
        %483 = vmatpush1.bf16.msra.mxu0 0
        %484 = vmatprep.subr.bf16.mxu0 0
        %485 = vmatpush1.bf16.msra.mxu0 0
        %486 = vmatprep.subr.bf16.mxu0 0
        %487 = vmatpush1.bf16.msra.mxu0 0
        %488 = vmatprep.subr.bf16.mxu0 0
        %489 = vmatpush1.bf16.msra.mxu0 0
        %490 = vmatprep.subr.bf16.mxu0 0
        %491 = vmatpush1.bf16.msra.mxu0 0
        %492 = vmatprep.subr.bf16.mxu0 0
        %493 = vmatpush1.bf16.msra.mxu0 0
        %494 = vmatprep.subr.bf16.mxu0 0
        %495 = vmatpush1.bf16.msra.mxu0 0
        %496 = vmatprep.subr.bf16.mxu0 0
        %497 = vmatpush1.bf16.msra.mxu0 0
        %498 = vmatprep.subr.bf16.mxu0 0
        %499 = vmatpush1.bf16.msra.mxu0 0
        %500 = vmatprep.subr.bf16.mxu0 0
        %501 = vmatpush1.bf16.msra.mxu0 0
        %502 = vmatprep.subr.bf16.mxu0 0
        %503 = vmatpush1.bf16.msra.mxu0 0
        %504 = vmatprep.subr.bf16.mxu0 0
        %505 = vmatpush1.bf16.msra.mxu0 0
        %506 = vmatprep.mubr.bf16.mxu0 0
        %507 = vmatmul.mubr.bf16.gmra.mrb[0].mxu0 %v346
        %v508 = vpop.f32.mrb[0].mxu0
        %v509 = vadd.f32 %v293, %v508
        %v510 = vpop.f32.mrb[0].mxu0
        %v511 = vpop.f32.mrb[0].mxu0
        %v512 = vadd.f32 %v298, %v511
        %v513 = vpop.f32.mrb[0].mxu0
        %514 = vmatprep.mubr.bf16.mxu0 0
        %515 = vmatmul.mubr.bf16.gmra.mrb[0].mxu0 %v349
        %v516 = vpop.f32.mrb[0].mxu0
        %v517 = vadd.f32 %v303, %v516
        %v518 = vpop.f32.mrb[0].mxu0
        %v519 = vpop.f32.mrb[0].mxu0
        %v520 = vadd.f32 %v308, %v519
        %v521 = vpop.f32.mrb[0].mxu0
        %522 = vdwg.mxu0
        %v523 = vmax.f32 %v509, -10.0
        %v524 = vmax.f32 %v512, -10.0
        %v525 = vmin.f32 %v523, 10.0
        %v526 = vmin.f32 %v524, 10.0
        %v527 = vmul.f32 %v525, 1.442695
        %v528 = vpow.pop %v527
        %v529 = vmul.f32 %v526, 1.442695
        %v530 = vpow.pop %v529
        %531 = vadd.xlane.f32.xlu0 %v528
        %v532 = vpop.xlane.xlu0 %531
        %533 = vadd.xlane.f32.xlu0 %v530
        %v534 = vpop.xlane.xlu0 %533
        %v535 = vrcp.pop %v532
        %v536 = vrcp.pop %v534
        %v537 = vmul.f32 %v528, %v535
        %v538 = vmul.f32 %v530, %v536
        %v539 = vxor.u32 %v517, 2147483648
        %v540 = vxor.u32 %v520, 2147483648
        %v541 = vmul.f32 %v539, 1.442695
        %v542 = vpow.pop %v541
        %v543 = vmul.f32 %v540, 1.442695
        %v544 = vpow.pop %v543
        %v545 = vadd.f32 %v542, 1.0
        %v546 = vadd.f32 %v544, 1.0
        %v547 = vrcp.pop %v545
        %v548 = vmul.f32 1.0, %v547
        %v549 = vrcp.pop %v546
        %v550 = vmul.f32 1.0, %v549
        %v551 = vmul.f32 %v537, %v548
        %v552 = vmul.f32 %v538, %v550
        %553 = vadd.xlane.f32.xlu0 %v551
        %v554 = vpop.xlane.xlu0 %553
        %555 = vadd.xlane.f32.xlu0 %v552
        %v556 = vpop.xlane.xlu0 %555
        %s557 = scalar_lea.vmem %s255, 16 [#allocation5]
        %558 = vst [vmem:[%s557] sm:$0xff] %v537
        %559 = vst [vmem:[%s557 + $0x8] sm:$0xff] %v538
        %s560 = scalar_lea.vmem %s262, 16 [#allocation6]
        %561 = vst [vmem:[%s560] sm:$0xff] %v548
        %562 = vst [vmem:[%s560 + $0x8] sm:$0xff] %v550
        %s563 = scalar_lea.vmem %s269, 16
        %564 = vst.msk [vmem:[%s563] sm:$0xff] %vm438, %v554
        %565 = vst.msk [vmem:[%s563 + $0x8] sm:$0xff] %vm438, %v556
        %s566 = scalar_lea.vmem %s225, 64 [#allocation2]
        %v567 = vld [vmem:[%s566] sm:$0xf]
        %v568 = vld [vmem:[%s566 + $0x4] sm:$0xf]
        %v569 = vld [vmem:[%s566 + $0x8] sm:$0xf]
        %v570 = vld [vmem:[%s566 + $0xc] sm:$0xf]
        %v571 = vld [vmem:[%s566 + $0x10] sm:$0xf]
        %v572 = vld [vmem:[%s566 + $0x14] sm:$0xf]
        %v573 = vld [vmem:[%s566 + $0x18] sm:$0xf]
        %v574 = vld [vmem:[%s566 + $0x1c] sm:$0xf]
        %v583 = vunpack.c.l.b16 %v567
        %v584 = vunpack.c.l.b16 %v568
        %v585 = vunpack.c.l.b16 %v569
        %v586 = vunpack.c.l.b16 %v570
        %v587 = vunpack.c.l.b16 %v571
        %v588 = vunpack.c.l.b16 %v572
        %v589 = vunpack.c.l.b16 %v573
        %v590 = vunpack.c.l.b16 %v574
        %v591 = vpack.c.b16 %v584, %v583
        %v592 = vpack.c.b16 %v586, %v585
        %v593 = vpack.c.b16 %v588, %v587
        %v594 = vpack.c.b16 %v590, %v589
        %599 = vmatprep.subr.bf16.mxu0 0
        %600 = vmatpush1.bf16.msra.mxu0 %v591
        %601 = vmatprep.subr.bf16.mxu0 0
        %602 = vmatpush1.bf16.msra.mxu0 %v592
        %603 = vmatprep.subr.bf16.mxu0 0
        %604 = vmatpush1.bf16.msra.mxu0 %v593
        %605 = vmatprep.subr.bf16.mxu0 0
        %606 = vmatpush1.bf16.msra.mxu0 %v594
        %607 = vmatprep.subr.bf16.mxu0 0
        %608 = vmatpush1.bf16.msra.mxu0 0
        %609 = vmatprep.subr.bf16.mxu0 0
        %610 = vmatpush1.bf16.msra.mxu0 0
        %611 = vmatprep.subr.bf16.mxu0 0
        %612 = vmatpush1.bf16.msra.mxu0 0
        %613 = vmatprep.subr.bf16.mxu0 0
        %614 = vmatpush1.bf16.msra.mxu0 0
        %615 = vmatprep.subr.bf16.mxu0 0
        %616 = vmatpush1.bf16.msra.mxu0 0
        %617 = vmatprep.subr.bf16.mxu0 0
        %618 = vmatpush1.bf16.msra.mxu0 0
        %619 = vmatprep.subr.bf16.mxu0 0
        %620 = vmatpush1.bf16.msra.mxu0 0
        %621 = vmatprep.subr.bf16.mxu0 0
        %622 = vmatpush1.bf16.msra.mxu0 0
        %623 = vmatprep.subr.bf16.mxu0 0
        %624 = vmatpush1.bf16.msra.mxu0 0
        %625 = vmatprep.subr.bf16.mxu0 0
        %626 = vmatpush1.bf16.msra.mxu0 0
        %627 = vmatprep.subr.bf16.mxu0 0
        %628 = vmatpush1.bf16.msra.mxu0 0
        %629 = vmatprep.subr.bf16.mxu0 0
        %630 = vmatpush1.bf16.msra.mxu0 0
        %631 = vmatprep.mubr.bf16.mxu0 0
        %632 = vmatmul.mubr.bf16.gmra.mrb[0].mxu0 %v346
        %v633 = vpop.f32.mrb[0].mxu0
        %v634 = vadd.f32 %v293, %v633
        %v635 = vpop.f32.mrb[0].mxu0
        %v636 = vpop.f32.mrb[0].mxu0
        %v637 = vadd.f32 %v298, %v636
        %v638 = vpop.f32.mrb[0].mxu0
        %639 = vmatprep.mubr.bf16.mxu0 0
        %640 = vmatmul.mubr.bf16.gmra.mrb[0].mxu0 %v349
        %v641 = vpop.f32.mrb[0].mxu0
        %v642 = vadd.f32 %v303, %v641
        %v643 = vpop.f32.mrb[0].mxu0
        %v644 = vpop.f32.mrb[0].mxu0
        %v645 = vadd.f32 %v308, %v644
        %v646 = vpop.f32.mrb[0].mxu0
        %647 = vdwg.mxu0
        %v648 = vmax.f32 %v634, -10.0
        %v649 = vmax.f32 %v637, -10.0
        %v650 = vmin.f32 %v648, 10.0
        %v651 = vmin.f32 %v649, 10.0
        %v652 = vmul.f32 %v650, 1.442695
        %v653 = vpow.pop %v652
        %v654 = vmul.f32 %v651, 1.442695
        %v655 = vpow.pop %v654
        %656 = vadd.xlane.f32.xlu0 %v653
        %v657 = vpop.xlane.xlu0 %656
        %658 = vadd.xlane.f32.xlu0 %v655
        %v659 = vpop.xlane.xlu0 %658
        %v660 = vrcp.pop %v657
        %v661 = vrcp.pop %v659
        %v662 = vmul.f32 %v653, %v660
        %v663 = vmul.f32 %v655, %v661
        %v664 = vxor.u32 %v642, 2147483648
        %v665 = vxor.u32 %v645, 2147483648
        %v666 = vmul.f32 %v664, 1.442695
        %v667 = vpow.pop %v666
        %v668 = vmul.f32 %v665, 1.442695
        %v669 = vpow.pop %v668
        %v670 = vadd.f32 %v667, 1.0
        %v671 = vadd.f32 %v669, 1.0
        %v672 = vrcp.pop %v670
        %v673 = vmul.f32 1.0, %v672
        %v674 = vrcp.pop %v671
        %v675 = vmul.f32 1.0, %v674
        %v676 = vmul.f32 %v662, %v673
        %v677 = vmul.f32 %v663, %v675
        %678 = vadd.xlane.f32.xlu0 %v676
        %v679 = vpop.xlane.xlu0 %678
        %680 = vadd.xlane.f32.xlu0 %v677
        %v681 = vpop.xlane.xlu0 %680
        %s682 = scalar_lea.vmem %s255, 32 [#allocation5]
        %683 = vst [vmem:[%s682] sm:$0xff] %v662
        %684 = vst [vmem:[%s682 + $0x8] sm:$0xff] %v663
        %s685 = scalar_lea.vmem %s262, 32 [#allocation6]
        %686 = vst [vmem:[%s685] sm:$0xff] %v673
        %687 = vst [vmem:[%s685 + $0x8] sm:$0xff] %v675
        %s688 = scalar_lea.vmem %s269, 32
        %689 = vst.msk [vmem:[%s688] sm:$0xff] %vm438, %v679
        %690 = vst.msk [vmem:[%s688 + $0x8] sm:$0xff] %vm438, %v681
        %s691 = scalar_lea.vmem %s225, 96 [#allocation2]
        %v692 = vld [vmem:[%s691] sm:$0xf]
        %v693 = vld [vmem:[%s691 + $0x4] sm:$0xf]
        %v694 = vld [vmem:[%s691 + $0x8] sm:$0xf]
        %v695 = vld [vmem:[%s691 + $0xc] sm:$0xf]
        %v696 = vld [vmem:[%s691 + $0x10] sm:$0xf]
        %v697 = vld [vmem:[%s691 + $0x14] sm:$0xf]
        %v698 = vld [vmem:[%s691 + $0x18] sm:$0xf]
        %v699 = vld [vmem:[%s691 + $0x1c] sm:$0xf]
        %v708 = vunpack.c.l.b16 %v692
        %v709 = vunpack.c.l.b16 %v693
        %v710 = vunpack.c.l.b16 %v694
        %v711 = vunpack.c.l.b16 %v695
        %v712 = vunpack.c.l.b16 %v696
        %v713 = vunpack.c.l.b16 %v697
        %v714 = vunpack.c.l.b16 %v698
        %v715 = vunpack.c.l.b16 %v699
        %v716 = vpack.c.b16 %v709, %v708
        %v717 = vpack.c.b16 %v711, %v710
        %v718 = vpack.c.b16 %v713, %v712
        %v719 = vpack.c.b16 %v715, %v714
        %724 = vmatprep.subr.bf16.mxu0 0
        %725 = vmatpush1.bf16.msra.mxu0 %v716
        %726 = vmatprep.subr.bf16.mxu0 0
        %727 = vmatpush1.bf16.msra.mxu0 %v717
        %728 = vmatprep.subr.bf16.mxu0 0
        %729 = vmatpush1.bf16.msra.mxu0 %v718
        %730 = vmatprep.subr.bf16.mxu0 0
        %731 = vmatpush1.bf16.msra.mxu0 %v719
        %732 = vmatprep.subr.bf16.mxu0 0
        %733 = vmatpush1.bf16.msra.mxu0 0
        %734 = vmatprep.subr.bf16.mxu0 0
        %735 = vmatpush1.bf16.msra.mxu0 0
        %736 = vmatprep.subr.bf16.mxu0 0
        %737 = vmatpush1.bf16.msra.mxu0 0
        %738 = vmatprep.subr.bf16.mxu0 0
        %739 = vmatpush1.bf16.msra.mxu0 0
        %740 = vmatprep.subr.bf16.mxu0 0
        %741 = vmatpush1.bf16.msra.mxu0 0
        %742 = vmatprep.subr.bf16.mxu0 0
        %743 = vmatpush1.bf16.msra.mxu0 0
        %744 = vmatprep.subr.bf16.mxu0 0
        %745 = vmatpush1.bf16.msra.mxu0 0
        %746 = vmatprep.subr.bf16.mxu0 0
        %747 = vmatpush1.bf16.msra.mxu0 0
        %748 = vmatprep.subr.bf16.mxu0 0
        %749 = vmatpush1.bf16.msra.mxu0 0
        %750 = vmatprep.subr.bf16.mxu0 0
        %751 = vmatpush1.bf16.msra.mxu0 0
        %752 = vmatprep.subr.bf16.mxu0 0
        %753 = vmatpush1.bf16.msra.mxu0 0
        %754 = vmatprep.subr.bf16.mxu0 0
        %755 = vmatpush1.bf16.msra.mxu0 0
        %756 = vmatprep.mubr.bf16.mxu0 0
        %757 = vmatmul.mubr.bf16.gmra.mrb[0].mxu0 %v346
        %v758 = vpop.f32.mrb[0].mxu0
        %v759 = vadd.f32 %v293, %v758
        %v760 = vpop.f32.mrb[0].mxu0
        %v761 = vpop.f32.mrb[0].mxu0
        %v762 = vadd.f32 %v298, %v761
        %v763 = vpop.f32.mrb[0].mxu0
        %764 = vmatprep.mubr.bf16.mxu0 0
        %765 = vmatmul.mubr.bf16.gmra.mrb[0].mxu0 %v349
        %v766 = vpop.f32.mrb[0].mxu0
        %v767 = vadd.f32 %v303, %v766
        %v768 = vpop.f32.mrb[0].mxu0
        %v769 = vpop.f32.mrb[0].mxu0
        %v770 = vadd.f32 %v308, %v769
        %v771 = vpop.f32.mrb[0].mxu0
        %772 = vdwg.mxu0
        %v773 = vmax.f32 %v759, -10.0
        %v774 = vmax.f32 %v762, -10.0
        %v775 = vmin.f32 %v773, 10.0
        %v776 = vmin.f32 %v774, 10.0
        %v777 = vmul.f32 %v775, 1.442695
        %v778 = vpow.pop %v777
        %v779 = vmul.f32 %v776, 1.442695
        %v780 = vpow.pop %v779
        %781 = vadd.xlane.f32.xlu0 %v778
        %v782 = vpop.xlane.xlu0 %781
        %783 = vadd.xlane.f32.xlu0 %v780
        %v784 = vpop.xlane.xlu0 %783
        %v785 = vrcp.pop %v782
        %v786 = vrcp.pop %v784
        %v787 = vmul.f32 %v778, %v785
        %v788 = vmul.f32 %v780, %v786
        %v789 = vxor.u32 %v767, 2147483648
        %v790 = vxor.u32 %v770, 2147483648
        %v791 = vmul.f32 %v789, 1.442695
        %v792 = vpow.pop %v791
        %v793 = vmul.f32 %v790, 1.442695
        %v794 = vpow.pop %v793
        %v795 = vadd.f32 %v792, 1.0
        %v796 = vadd.f32 %v794, 1.0
        %v797 = vrcp.pop %v795
        %v798 = vmul.f32 1.0, %v797
        %v799 = vrcp.pop %v796
        %v800 = vmul.f32 1.0, %v799
        %v801 = vmul.f32 %v787, %v798
        %v802 = vmul.f32 %v788, %v800
        %803 = vadd.xlane.f32.xlu0 %v801
        %v804 = vpop.xlane.xlu0 %803
        %805 = vadd.xlane.f32.xlu0 %v802
        %v806 = vpop.xlane.xlu0 %805
        %s807 = scalar_lea.vmem %s255, 48 [#allocation5]
        %808 = vst [vmem:[%s807] sm:$0xff] %v787
        %809 = vst [vmem:[%s807 + $0x8] sm:$0xff] %v788
        %s810 = scalar_lea.vmem %s262, 48 [#allocation6]
        %811 = vst [vmem:[%s810] sm:$0xff] %v798
        %812 = vst [vmem:[%s810 + $0x8] sm:$0xff] %v800
        %s813 = scalar_lea.vmem %s269, 48
        %814 = vst.msk [vmem:[%s813] sm:$0xff] %vm438, %v804
        %815 = vst.msk [vmem:[%s813 + $0x8] sm:$0xff] %vm438, %v806
        %s816 = smul.u32 4, %s26
        %p817 = scmp.lt.s32.totalorder %s816, 7
        %s818 = scalar_select %p817, %s816, 7
        %s819 = smul.addr %s818, 2
        %s820 = smul.addr %s819, 8
        %s821 = scalar_lea.vmem %s3, %s820
        %s822 = sand.u32 %s128, 1
        %s823 = scalar_lea.sflag [#allocation4], %s822
        %s824 = sand.u32 %s128, 1
        %s825 = smul.addr %s824, 64
        %s826 = scalar_lea.vmem [#allocation5], %s825
        %s827 = sand.u32 %s154, 1
        %s828 = scalar_lea.sflag [#allocation7], %s827
        %s829 = sand.u32 %s154, 1
        %s830 = smul.addr %s829, 64
        %s831 = scalar_lea.vmem [#allocation6], %s830
        // Predicated region
        $region37: #{tpu_custom_call.1} parent=31 // pred_check
          %p832 = pneg %p112
        $region38: #{tpu_custom_call.1} parent=31 // pred_check_branch
          %834 = sbr.rel (%p832) target = $region40
        $region39: #{tpu_custom_call.1} parent=31 // pred_region
          %s835 = smul.u32 4, %s26
        $region40: #{tpu_custom_call.1} parent=31 // pred_fallthru
          _
        // Predicated region
        $region41: #{tpu_custom_call.1} parent=31 // pred_check
          %p836 = pneg %p138
        $region42: #{tpu_custom_call.1} parent=31 // pred_check_branch
          %838 = sbr.rel (%p836) target = $region44
        $region43: #{tpu_custom_call.1} parent=31 // pred_region
          %s839 = smul.u32 4, %s26
          %s841 = ssub.s32 1024, 1024
          %842 = vsyncadd %s823, %s841
          %s843 = smul.addr %s839, 2
          %s844 = smul.addr %s843, 128
          %s845 = scalar_lea.hbm %s4, %s844
          %s846 = sshll.u32 %s826, 4
          %s847 = int_to_ptr.vmem [resolvable:$true] %s846
          %852 = dma.vmem_to_hbm [thread:$0]  %s847, 1024, %s845, %s823, 128, 128, 8
        $region44: #{tpu_custom_call.1} parent=31 // pred_fallthru
          _
        // Predicated region
        $region45: #{tpu_custom_call.1} parent=31 // pred_check
          %p853 = pneg %p164
        $region46: #{tpu_custom_call.1} parent=31 // pred_check_branch
          %855 = sbr.rel (%p853) target = $region48
        $region47: #{tpu_custom_call.1} parent=31 // pred_region
          %s856 = smul.u32 4, %s26
          %s858 = ssub.s32 1024, 1024
          %859 = vsyncadd %s828, %s858
          %s860 = smul.addr %s856, 2
          %s861 = smul.addr %s860, 128
          %s862 = scalar_lea.hbm %s5, %s861
          %s863 = sshll.u32 %s831, 4
          %s864 = int_to_ptr.vmem [resolvable:$true] %s863
          %869 = dma.vmem_to_hbm [thread:$0]  %s864, 1024, %s862, %s828, 128, 128, 8
        $region48: #{tpu_custom_call.1} parent=31 // pred_fallthru
          _
      $region32: #{tpu_custom_call.1} parent=5 // pred_fallthru
        _
      %p870 = scmp.le.s32.totalorder 2, %s21
      // Predicated region
      $region49: #{tpu_custom_call.1} parent=5 // pred_check
        %p871 = pneg %p870
      $region50: #{tpu_custom_call.1} parent=5 // pred_check_branch
        %873 = sbr.rel (%p871) target = $region52
      $region51: #{tpu_custom_call.1} parent=5 // pred_region
        %s874 = ssub.s32 %s21, 2
        // Predicated region
        $region53: #{tpu_custom_call.1} parent=51 // pred_check
          %p875 = pneg %p118
        $region54: #{tpu_custom_call.1} parent=51 // pred_check_branch
          %877 = sbr.rel (%p875) target = $region56
        $region55: #{tpu_custom_call.1} parent=51 // pred_region
          %s878 = smul.u32 4, %s27
          %p879 = scmp.lt.s32.totalorder %s878, 7
          %s880 = scalar_select %p879, %s878, 7
          %s881 = smul.addr %s880, 2
          %s882 = smul.addr %s881, 8
          %s883 = scalar_lea.vmem %s3, %s882
        $region56: #{tpu_custom_call.1} parent=51 // pred_fallthru
          _
        // Predicated region
        $region57: #{tpu_custom_call.1} parent=51 // pred_check
          %p884 = pneg %p144
        $region58: #{tpu_custom_call.1} parent=51 // pred_check_branch
          %886 = sbr.rel (%p884) target = $region60
        $region59: #{tpu_custom_call.1} parent=51 // pred_region
          %s887 = sand.u32 %s129, 1
          %s888 = scalar_lea.sflag [#allocation4], %s887
          %s889 = sand.u32 %s129, 1
          %s890 = smul.addr %s889, 64
          %s891 = scalar_lea.vmem [#allocation5], %s890
          %892 = dma.done %s888, 1024
        $region60: #{tpu_custom_call.1} parent=51 // pred_fallthru
          _
        // Predicated region
        $region61: #{tpu_custom_call.1} parent=51 // pred_check
          %p893 = pneg %p170
        $region62: #{tpu_custom_call.1} parent=51 // pred_check_branch
          %895 = sbr.rel (%p893) target = $region64
        $region63: #{tpu_custom_call.1} parent=51 // pred_region
          %s896 = sand.u32 %s155, 1
          %s897 = scalar_lea.sflag [#allocation7], %s896
          %s898 = sand.u32 %s155, 1
          %s899 = smul.addr %s898, 64
          %s900 = scalar_lea.vmem [#allocation6], %s899
          %901 = dma.done %s897, 1024
        $region64: #{tpu_custom_call.1} parent=51 // pred_fallthru
          _
      $region52: #{tpu_custom_call.1} parent=5 // pred_fallthru
        _
    $region6: #{tpu_custom_call.1} parent=1 // loop_footer
      %s25 = sadd.s32 1, %s21
    $region7: #{tpu_custom_call.1} parent=1 // loop_footer_branch
      %20 = sbr.rel target = $region3
    $region8: #{tpu_custom_call.1} parent=1 // loop_exit
      _
    %902 = vsyncpa [#allocation3], 1
    %s903 = scalar_lea.sflag [#allocation3], 1
    %904 = vsyncpa %s903, 1
    %905 = vsyncpa [#allocation4], 1
    %s906 = scalar_lea.sflag [#allocation4], 1
    %907 = vsyncpa %s906, 1
    %908 = vsyncpa [#allocation7], 1
    %s909 = scalar_lea.sflag [#allocation7], 1
    %910 = vsyncpa %s909, 1

</llo_original>
